<compile_context>
chip_gen: v6e
topology: v6e:2x2x1
jax: 0.10.0
libtpu: 0.0.40
codegen_flags: <defaults>
</compile_context>

<pallas_src>
import jax
import jax.numpy as jnp
from jax.experimental import pallas as pl
from jax.experimental.pallas import tpu as pltpu


def _round_up(x, m):
    return ((x + m - 1) // m) * m


def _attention_kernel(v_ref, q_ref, w1v_ref, w1q_ref, b1_ref, w2_ref, out_ref):
    """One grid step processes BT batch rows.

    v_ref   : [BT, K*V]    compute dtype (bf16 default), lane-dense objects
    q_ref   : [BT, Q]      f32
    w1v_ref : [K*V, K*Hp]  compute dtype, block-diag kron(I_K, W1v)   (resident)
    w1q_ref : [Q, K*Hp]    f32, W1q tiled K times along columns       (resident)
    b1_ref  : [1, K*Hp]    f32, b1 tiled K times                      (resident)
    w2_ref  : [K*Hp, K]    f32, block-diag kron(I_K, w2^T)            (resident)
    out_ref : [BT, K]      f32 softmax weights over K
    """
    # Hidden layer: v part (block-diagonal) + q part (same for every object k)
    # + bias, all accumulated in f32.
    hv = jnp.dot(v_ref[...], w1v_ref[...], preferred_element_type=jnp.float32)
    hq = jnp.dot(q_ref[...], w1q_ref[...], preferred_element_type=jnp.float32)
    h = jnp.maximum(hv + hq + b1_ref[...], 0.0)                        # [BT, K*Hp]

    # Per-object logits: block-diagonal w2 reduce.  b2 is dropped: softmax over
    # K is invariant to a scalar logit shift.
    logits = jnp.dot(h, w2_ref[...], preferred_element_type=jnp.float32)  # [BT, K]

    # Softmax over K (lane axis).
    m = jnp.max(logits, axis=-1, keepdims=True)
    e = jnp.exp(logits - m)
    denom = jnp.sum(e, axis=-1, keepdims=True)
    out_ref[...] = (e * pl.reciprocal(denom, approx=True)).astype(out_ref.dtype)


def attention_forward(v, q, params, *, block_b=None, compute_dtype=jnp.bfloat16):
    """v: [B, K, v_dim] f32, q: [B, q_dim] f32 -> softmax weights [B, K, 1] f32."""
    B, K, v_dim = v.shape
    q_dim = q.shape[1]

    w1_raw, g1, b1 = params["w1_v"], params["w1_g"], params["b1"]   # [H, v+q], (), [H]
    w2_raw, g2 = params["w2_v"], params["w2_g"]                     # [1, H], ()
    # params["b2"] intentionally unused: it cancels under the softmax.

    # weight_norm(dim=None): W_eff = g * V / ||V||_F (scalar Frobenius norm).
    w1 = (g1 / jnp.linalg.norm(w1_raw)) * w1_raw                    # [H, v_dim+q_dim]
    w2 = (g2 / jnp.linalg.norm(w2_raw)) * w2_raw                    # [1, H]
    H = w1.shape[0]
    H_pad = _round_up(H, 128)

    # Split concat(v, q) @ W1^T into a v part and a q part; pad H to a full lane
    # width (zero columns are exact no-ops: relu(0)*0 contributes nothing).
    w1v_p = jnp.zeros((v_dim, H_pad), jnp.float32).at[:, :H].set(w1[:, :v_dim].T)
    w1q_p = jnp.zeros((q_dim, H_pad), jnp.float32).at[:, :H].set(w1[:, v_dim:].T)
    w2_p = jnp.zeros((H_pad, 1), jnp.float32).at[:H, :].set(w2.T)
    b1_p = jnp.zeros((1, H_pad), jnp.float32).at[:, :H].set(b1[None, :])

    # Block-structured resident weights so the kernel works on a lane-dense
    # [BT, K*v_dim] v slab without any in-kernel reshape/transpose.
    eye = jnp.eye(K, dtype=jnp.float32)
    w1_blk = jnp.kron(eye, w1v_p).astype(compute_dtype)             # [K*v_dim, K*H_pad]
    w1q_tiled = jnp.tile(w1q_p, (1, K))                             # [q_dim, K*H_pad] f32
    b1_tiled = jnp.tile(b1_p, (1, K))                               # [1, K*H_pad]     f32
    w2_blk = jnp.kron(eye, w2_p)                                    # [K*H_pad, K]     f32

    # Lane-dense, row-major-contiguous v rows (free in HBM).
    v_flat = v.reshape(B, K * v_dim).astype(compute_dtype)          # [B, K*v_dim]
    q_f32 = q.astype(jnp.float32)                                   # [B, q_dim]

    # Batch tile: large by default to amortize per-step overhead; multiple of 8
    # (sublanes) when the batch is split across several grid steps.
    if block_b is None:
        block_b = 512
    if B <= block_b:
        bt, b_pad = B, B
    else:
        bt = max(8, (block_b // 8) * 8)
        b_pad = _round_up(B, bt)

    if b_pad != B:
        # Zero-padded batch rows produce a uniform softmax and are sliced off below.
        v_flat = jnp.pad(v_flat, ((0, b_pad - B), (0, 0)))
        q_f32 = jnp.pad(q_f32, ((0, b_pad - B), (0, 0)))

    kv = K * v_dim
    kh = K * H_pad

    out = pl.pallas_call(
        _attention_kernel,
        out_shape=jax.ShapeDtypeStruct((b_pad, K), jnp.float32),
        grid_spec=pltpu.PrefetchScalarGridSpec(
            num_scalar_prefetch=0,
            grid=(b_pad // bt,),
            in_specs=[
                pl.BlockSpec((bt, kv), lambda b: (b, 0)),        # v slab   (streamed)
                pl.BlockSpec((bt, q_dim), lambda b: (b, 0)),     # q        (streamed)
                pl.BlockSpec((kv, kh), lambda b: (0, 0)),        # kron(I, W1v), resident
                pl.BlockSpec((q_dim, kh), lambda b: (0, 0)),     # W1q tiled,    resident
                pl.BlockSpec((1, kh), lambda b: (0, 0)),         # b1 tiled,     resident
                pl.BlockSpec((kh, K), lambda b: (0, 0)),         # kron(I, w2^T), resident
            ],
            out_specs=pl.BlockSpec((bt, K), lambda b: (b, 0)),   # [BT, K] weights
        ),
        compiler_params=pltpu.CompilerParams(
            dimension_semantics=("parallel",),
            vmem_limit_bytes=32 * 1024 * 1024),
    )(v_flat, q_f32, w1_blk, w1q_tiled, b1_tiled, w2_blk)

    return out[:B].reshape(B, K, 1)


def init_params(key, v_dim, q_dim, num_hid):
    """Deterministic synthetic parameters matching the module's shapes."""
    k1, k2, k3, k4 = jax.random.split(key, 4)
    in_dim = v_dim + q_dim
    return {
        # FCNet: weight_norm(Linear(v_dim+q_dim, num_hid), dim=None) + ReLU
        "w1_v": jax.random.normal(k1, (num_hid, in_dim), jnp.float32) * 0.1,
        "w1_g": jnp.float32(1.0),
        "b1": jax.random.normal(k2, (num_hid,), jnp.float32) * 0.1,
        # weight_norm(Linear(num_hid, 1), dim=None)
        "w2_v": jax.random.normal(k3, (1, num_hid), jnp.float32) * 0.1,
        "w2_g": jnp.float32(1.0),
        "b2": jax.random.normal(k4, (1,), jnp.float32) * 0.1,
    }


def _reference(v, q, params):
    """Pure-JAX reference mirroring the PyTorch forward (includes b2)."""
    w1 = params["w1_g"] * params["w1_v"] / jnp.linalg.norm(params["w1_v"])
    w2 = params["w2_g"] * params["w2_v"] / jnp.linalg.norm(params["w2_v"])
    B, K, _ = v.shape
    q_rep = jnp.broadcast_to(q[:, None, :], (B, K, q.shape[1]))
    vq = jnp.concatenate([v, q_rep], axis=2)
    joint = jax.nn.relu(jnp.einsum("bki,hi->bkh", vq, w1) + params["b1"])
    logits = jnp.einsum("bkh,oh->bko", joint, w2) + params["b2"]
    return jax.nn.softmax(logits, axis=1)


if __name__ == "__main__":
    V_DIM, Q_DIM, NUM_HID, K = 16, 16, 32, 8

    key = jax.random.PRNGKey(0)
    kp, kv1, kq1, kv2, kq2 = jax.random.split(key, 5)
    params = init_params(kp, V_DIM, Q_DIM, NUM_HID)

    # --- run 1: small batch, f32 MXU inputs, single grid step ---------------
    B1 = 2
    v1 = jax.random.normal(kv1, (B1, K, V_DIM), jnp.float32)
    q1 = jax.random.normal(kq1, (B1, Q_DIM), jnp.float32)
    out1 = jax.block_until_ready(
        attention_forward(v1, q1, params, compute_dtype=jnp.float32))
    ref1 = _reference(v1, q1, params)
    assert out1.shape == (B1, K, 1), out1.shape
    assert jnp.allclose(out1, ref1, atol=5e-3, rtol=5e-3), "f32 mismatch vs reference"
    assert jnp.allclose(jnp.sum(out1, axis=1), 1.0, atol=1e-2)

    # --- run 2: multi-step grid + batch padding + default bf16 MXU inputs ---
    B2 = 20
    v2 = jax.random.normal(kv2, (B2, K, V_DIM), jnp.float32)
    q2 = jax.random.normal(kq2, (B2, Q_DIM), jnp.float32)
    out2 = jax.block_until_ready(
        attention_forward(v2, q2, params, block_b=8))   # bf16 default compute
    ref2 = _reference(v2, q2, params)
    assert out2.shape == (B2, K, 1), out2.shape
    assert jnp.allclose(out2, ref2, atol=2e-2, rtol=2e-2), "bf16 mismatch vs reference"
    assert jnp.allclose(jnp.sum(out2, axis=1), 1.0, atol=1e-2)

    print("KERNEL_OK")
</pallas_src>

<mosaic_0001>
module attributes {stable_mosaic.version = 11 : i64} {
  func.func @_attention_kernel(%arg0: i32, %arg1: memref<2x128xf32, #tpu.memory_space<vmem>>, %arg2: memref<2x16xf32, #tpu.memory_space<vmem>>, %arg3: memref<128x1024xf32, #tpu.memory_space<vmem>>, %arg4: memref<16x1024xf32, #tpu.memory_space<vmem>>, %arg5: memref<1x1024xf32, #tpu.memory_space<vmem>>, %arg6: memref<1024x8xf32, #tpu.memory_space<vmem>>, %arg7: memref<2x8xf32, #tpu.memory_space<vmem>>) attributes {dimension_semantics = [#tpu.dimension_semantics<parallel>], iteration_bounds = array<i64: 1>, scalar_prefetch = 0 : i64, scratch_operands = 0 : i64, tpu.core_type = #tpu.core_type<tc>, window_params = [{transform_indices = @transform_0, window_bounds = array<i64: 2, 128>}, {transform_indices = @transform_1, window_bounds = array<i64: 2, 16>}, {pipeline_mode = #tpu.pipeline_mode<synchronous>, transform_indices = @transform_2, window_bounds = array<i64: 128, 1024>}, {pipeline_mode = #tpu.pipeline_mode<synchronous>, transform_indices = @transform_3, window_bounds = array<i64: 16, 1024>}, {pipeline_mode = #tpu.pipeline_mode<synchronous>, transform_indices = @transform_4, window_bounds = array<i64: 1, 1024>}, {pipeline_mode = #tpu.pipeline_mode<synchronous>, transform_indices = @transform_5, window_bounds = array<i64: 1024, 8>}, {transform_indices = @transform_6, window_bounds = array<i64: 2, 8>}]} {
    %c0 = arith.constant 0 : index
    %c0_0 = arith.constant 0 : index
    %0 = vector.load %arg1[%c0, %c0_0] : memref<2x128xf32, #tpu.memory_space<vmem>>, vector<2x128xf32>
    %c0_1 = arith.constant 0 : index
    %c0_2 = arith.constant 0 : index
    %1 = vector.load %arg3[%c0_1, %c0_2] : memref<128x1024xf32, #tpu.memory_space<vmem>>, vector<128x1024xf32>
    %cst = arith.constant dense<0.000000e+00> : vector<2x1024xf32>
    %2 = tpu.matmul %0, %1, %cst {dimension_numbers = #tpu.dot_dimension_numbers<[1], [0], [0], [1], [0, 0, 1, 1], [], []>} : vector<2x128xf32>, vector<128x1024xf32>, vector<2x1024xf32> -> vector<2x1024xf32>
    %c0_3 = arith.constant 0 : index
    %c0_4 = arith.constant 0 : index
    %3 = vector.load %arg2[%c0_3, %c0_4] : memref<2x16xf32, #tpu.memory_space<vmem>>, vector<2x16xf32>
    %c0_5 = arith.constant 0 : index
    %c0_6 = arith.constant 0 : index
    %4 = vector.load %arg4[%c0_5, %c0_6] : memref<16x1024xf32, #tpu.memory_space<vmem>>, vector<16x1024xf32>
    %cst_7 = arith.constant dense<0.000000e+00> : vector<2x1024xf32>
    %5 = tpu.matmul %3, %4, %cst_7 {dimension_numbers = #tpu.dot_dimension_numbers<[1], [0], [0], [1], [0, 0, 1, 1], [], []>} : vector<2x16xf32>, vector<16x1024xf32>, vector<2x1024xf32> -> vector<2x1024xf32>
    %6 = arith.addf %2, %5 : vector<2x1024xf32>
    %c0_8 = arith.constant 0 : index
    %c0_9 = arith.constant 0 : index
    %7 = vector.load %arg5[%c0_8, %c0_9] : memref<1x1024xf32, #tpu.memory_space<vmem>>, vector<1x1024xf32>
    %8 = vector.broadcast %7 : vector<1x1024xf32> to vector<2x1024xf32>
    %9 = arith.addf %6, %8 : vector<2x1024xf32>
    %cst_10 = arith.constant 0.000000e+00 : f32
    %10 = vector.broadcast %cst_10 : f32 to vector<2x1024xf32>
    %11 = arith.maximumf %9, %10 : vector<2x1024xf32>
    %c0_11 = arith.constant 0 : index
    %c0_12 = arith.constant 0 : index
    %12 = vector.load %arg6[%c0_11, %c0_12] : memref<1024x8xf32, #tpu.memory_space<vmem>>, vector<1024x8xf32>
    %cst_13 = arith.constant dense<0.000000e+00> : vector<2x8xf32>
    %13 = tpu.matmul %11, %12, %cst_13 {dimension_numbers = #tpu.dot_dimension_numbers<[1], [0], [0], [1], [0, 0, 1, 1], [], []>} : vector<2x1024xf32>, vector<1024x8xf32>, vector<2x8xf32> -> vector<2x8xf32>
    %cst_14 = arith.constant dense<0xFF800000> : vector<2xf32>
    %14 = vector.multi_reduction <maximumf>, %13, %cst_14 [1] : vector<2x8xf32> to vector<2xf32>
    %15 = vector.shape_cast %14 : vector<2xf32> to vector<2x1xf32>
    %16 = vector.broadcast %15 : vector<2x1xf32> to vector<2x8xf32>
    %17 = arith.subf %13, %16 : vector<2x8xf32>
    %18 = math.exp %17 : vector<2x8xf32>
    %cst_15 = arith.constant dense<0.000000e+00> : vector<2xf32>
    %19 = vector.multi_reduction <add>, %18, %cst_15 [1] : vector<2x8xf32> to vector<2xf32>
    %20 = vector.shape_cast %19 : vector<2xf32> to vector<2x1xf32>
    %21 = tpu.reciprocal %20 {approx = true} : vector<2x1xf32> -> vector<2x1xf32>
    %22 = vector.broadcast %21 : vector<2x1xf32> to vector<2x8xf32>
    %23 = arith.mulf %18, %22 : vector<2x8xf32>
    %c0_16 = arith.constant 0 : index
    %c0_17 = arith.constant 0 : index
    %24 = vector.load %arg7[%c0_16, %c0_17] : memref<2x8xf32, #tpu.memory_space<vmem>>, vector<2x8xf32>
    tpu.vector_store %arg7[%c0_16, %c0_17], %23 {strides = array<i32>} : memref<2x8xf32, #tpu.memory_space<vmem>>, vector<2x8xf32>,
    return
  }
  func.func @transform_0(%arg0: i32) -> (i32, i32) {
    %c0_i32 = arith.constant 0 : i32
    %c0_i32_0 = arith.constant 0 : i32
    return %arg0, %c0_i32 : i32, i32
  }
  func.func @transform_1(%arg0: i32) -> (i32, i32) {
    %c0_i32 = arith.constant 0 : i32
    %c0_i32_0 = arith.constant 0 : i32
    return %arg0, %c0_i32 : i32, i32
  }
  func.func @transform_2(%arg0: i32) -> (i32, i32) {
    %c0_i32 = arith.constant 0 : i32
    %c0_i32_0 = arith.constant 0 : i32
    %c0_i32_1 = arith.constant 0 : i32
    return %c0_i32, %c0_i32_0 : i32, i32
  }
  func.func @transform_3(%arg0: i32) -> (i32, i32) {
    %c0_i32 = arith.constant 0 : i32
    %c0_i32_0 = arith.constant 0 : i32
    %c0_i32_1 = arith.constant 0 : i32
    return %c0_i32, %c0_i32_0 : i32, i32
  }
  func.func @transform_4(%arg0: i32) -> (i32, i32) {
    %c0_i32 = arith.constant 0 : i32
    %c0_i32_0 = arith.constant 0 : i32
    %c0_i32_1 = arith.constant 0 : i32
    return %c0_i32, %c0_i32_0 : i32, i32
  }
  func.func @transform_5(%arg0: i32) -> (i32, i32) {
    %c0_i32 = arith.constant 0 : i32
    %c0_i32_0 = arith.constant 0 : i32
    %c0_i32_1 = arith.constant 0 : i32
    return %c0_i32, %c0_i32_0 : i32, i32
  }
  func.func @transform_6(%arg0: i32) -> (i32, i32) {
    %c0_i32 = arith.constant 0 : i32
    %c0_i32_0 = arith.constant 0 : i32
    return %arg0, %c0_i32 : i32, i32
  }
}

</mosaic_0001>

<llo_original>
// kernel: tpu_custom_call.1
$region0: #{tpu_custom_call.1}
  #allocation0 [shape = 'u32[]', space=smem, size = 0x4, offset = 0x4, fixed_abs, tag = 'smem constant byte address 0x4 - core index']
  #allocation1 [shape = 'u32[144,128]{1,0:T(1,128)}', space=vmem, size = 0x12000, scoped, tag = 'internal scratch']
  %s0 = inlined_call_operand.vmem [shape: f32[2,128], index: 0, kind: input, shape index: {}]
  %s1 = inlined_call_operand.vmem [shape: f32[2,16], index: 1, kind: input, shape index: {}]
  %s2 = inlined_call_operand.vmem [shape: f32[128,1024], index: 2, kind: input, shape index: {}]
  %s3 = inlined_call_operand.hbm [shape: f32[16,1024], index: 3, kind: input, shape index: {}]
  %s4 = inlined_call_operand.vmem [shape: f32[1,1024], index: 4, kind: input, shape index: {}]
  %s5 = inlined_call_operand.vmem [shape: f32[1024,8], index: 5, kind: input, shape index: {}]
  %s6 = inlined_call_operand.hbm [shape: f32[2,8], index: 6, kind: output, shape index: {}]
  %s7 = sld [smem:[#allocation0]]
  $region38: #{tpu_custom_call.1} parent=0
    _
  %s9 = ssub.s32 1, %s7
  %s10 = scalar_select 0, %s9, %s7
  $region1: #{tpu_custom_call.1} parent=0
    #allocation2 [shape = 'u8[65536]{0}', space=vmem, size = 0x10000, scoped, tag = 'input window, operand 3, single buffered']
    #allocation3 [shape = 's32[1]{0}', space=sflag, size = 0x4, scoped, tag = 'scoped memory for tpu_custom_call.1']
    #allocation4 [shape = 's32[1]{0}', space=sflag, size = 0x4, scoped, tag = 'scoped memory for tpu_custom_call.1']
    #allocation5 [shape = 'u8[1024]{0}', space=vmem, size = 0x400, scoped, tag = 'output window, operand 0, single buffered']
    %11 = vsyncpa [#allocation3], 0
    %12 = vsyncpa [#allocation4], 0
    // Predicated region
    $region2: #{tpu_custom_call.1} parent=1 // pred_check
      _
    $region3: #{tpu_custom_call.1} parent=1 // pred_check_branch
      %14 = sbr.rel (0) target = $region5
    $region4: #{tpu_custom_call.1} parent=1 // pred_region
      _
    $region5: #{tpu_custom_call.1} parent=1 // pred_fallthru
      _
    // Predicated region
    $region6: #{tpu_custom_call.1} parent=1 // pred_check
      _
    $region7: #{tpu_custom_call.1} parent=1 // pred_check_branch
      %16 = sbr.rel (0) target = $region9
    $region8: #{tpu_custom_call.1} parent=1 // pred_region
      _
    $region9: #{tpu_custom_call.1} parent=1 // pred_fallthru
      _
    // Predicated region
    $region10: #{tpu_custom_call.1} parent=1 // pred_check
      _
    $region11: #{tpu_custom_call.1} parent=1 // pred_check_branch
      %18 = sbr.rel (0) target = $region13
    $region12: #{tpu_custom_call.1} parent=1 // pred_region
      _
    $region13: #{tpu_custom_call.1} parent=1 // pred_fallthru
      _
    // Predicated region
    $region14: #{tpu_custom_call.1} parent=1 // pred_check
      _
    $region15: #{tpu_custom_call.1} parent=1 // pred_check_branch
      %20 = sbr.rel (0) target = $region17
    $region16: #{tpu_custom_call.1} parent=1 // pred_region
      %s22 = ssub.s32 2048, 2048
      %23 = vsyncadd [#allocation3], %s22
      %s24 = sshll.u32 [#allocation2], 4
      %s25 = int_to_ptr.vmem [resolvable:$true] %s24
      %30 = dma.hbm_to_vmem [thread:$0]  %s3, 2048, %s25, [#allocation3], 1024, 1024, 64
    $region17: #{tpu_custom_call.1} parent=1 // pred_fallthru
      _
    // Predicated region
    $region18: #{tpu_custom_call.1} parent=1 // pred_check
      _
    $region19: #{tpu_custom_call.1} parent=1 // pred_check_branch
      %32 = sbr.rel (0) target = $region21
    $region20: #{tpu_custom_call.1} parent=1 // pred_region
      _
    $region21: #{tpu_custom_call.1} parent=1 // pred_fallthru
      _
    // Predicated region
    $region22: #{tpu_custom_call.1} parent=1 // pred_check
      _
    $region23: #{tpu_custom_call.1} parent=1 // pred_check_branch
      %34 = sbr.rel (0) target = $region25
    $region24: #{tpu_custom_call.1} parent=1 // pred_region
      _
    $region25: #{tpu_custom_call.1} parent=1 // pred_fallthru
      _
    // Predicated region
    $region26: #{tpu_custom_call.1} parent=1 // pred_check
      _
    $region27: #{tpu_custom_call.1} parent=1 // pred_check_branch
      %36 = sbr.rel (0) target = $region29
    $region28: #{tpu_custom_call.1} parent=1 // pred_region
      %37 = dma.done [#allocation3], 2048
    $region29: #{tpu_custom_call.1} parent=1 // pred_fallthru
      _
    %v38 = vld [vmem:[%s0] sm:$0x3]
    %v39 = vld [vmem:[%s2] sm:$0xff]
    %v40 = vld [vmem:[%s2 + $0x8] sm:$0xff]
    %v41 = vld [vmem:[%s2 + $0x10] sm:$0xff]
    %v42 = vld [vmem:[%s2 + $0x18] sm:$0xff]
    %v43 = vld [vmem:[%s2 + $0x20] sm:$0xff]
    %v44 = vld [vmem:[%s2 + $0x28] sm:$0xff]
    %v45 = vld [vmem:[%s2 + $0x30] sm:$0xff]
    %v46 = vld [vmem:[%s2 + $0x38] sm:$0xff]
    %v47 = vld [vmem:[%s2 + $0x40] sm:$0xff]
    %v48 = vld [vmem:[%s2 + $0x48] sm:$0xff]
    %v49 = vld [vmem:[%s2 + $0x50] sm:$0xff]
    %v50 = vld [vmem:[%s2 + $0x58] sm:$0xff]
    %v51 = vld [vmem:[%s2 + $0x60] sm:$0xff]
    %v52 = vld [vmem:[%s2 + $0x68] sm:$0xff]
    %v53 = vld [vmem:[%s2 + $0x70] sm:$0xff]
    %v54 = vld [vmem:[%s2 + $0x78] sm:$0xff]
    %v55 = vld [vmem:[%s2 + $0x80] sm:$0xff]
    %v56 = vld [vmem:[%s2 + $0x88] sm:$0xff]
    %v57 = vld [vmem:[%s2 + $0x90] sm:$0xff]
    %v58 = vld [vmem:[%s2 + $0x98] sm:$0xff]
    %v59 = vld [vmem:[%s2 + $0xa0] sm:$0xff]
    %v60 = vld [vmem:[%s2 + $0xa8] sm:$0xff]
    %v61 = vld [vmem:[%s2 + $0xb0] sm:$0xff]
    %v62 = vld [vmem:[%s2 + $0xb8] sm:$0xff]
    %v63 = vld [vmem:[%s2 + $0xc0] sm:$0xff]
    %v64 = vld [vmem:[%s2 + $0xc8] sm:$0xff]
    %v65 = vld [vmem:[%s2 + $0xd0] sm:$0xff]
    %v66 = vld [vmem:[%s2 + $0xd8] sm:$0xff]
    %v67 = vld [vmem:[%s2 + $0xe0] sm:$0xff]
    %v68 = vld [vmem:[%s2 + $0xe8] sm:$0xff]
    %v69 = vld [vmem:[%s2 + $0xf0] sm:$0xff]
    %v70 = vld [vmem:[%s2 + $0xf8] sm:$0xff]
    %v71 = vld [vmem:[%s2 + $0x100] sm:$0xff]
    %v72 = vld [vmem:[%s2 + $0x108] sm:$0xff]
    %v73 = vld [vmem:[%s2 + $0x110] sm:$0xff]
    %v74 = vld [vmem:[%s2 + $0x118] sm:$0xff]
    %v75 = vld [vmem:[%s2 + $0x120] sm:$0xff]
    %v76 = vld [vmem:[%s2 + $0x128] sm:$0xff]
    %v77 = vld [vmem:[%s2 + $0x130] sm:$0xff]
    %v78 = vld [vmem:[%s2 + $0x138] sm:$0xff]
    %v79 = vld [vmem:[%s2 + $0x140] sm:$0xff]
    %v80 = vld [vmem:[%s2 + $0x148] sm:$0xff]
    %v81 = vld [vmem:[%s2 + $0x150] sm:$0xff]
    %v82 = vld [vmem:[%s2 + $0x158] sm:$0xff]
    %v83 = vld [vmem:[%s2 + $0x160] sm:$0xff]
    %v84 = vld [vmem:[%s2 + $0x168] sm:$0xff]
    %v85 = vld [vmem:[%s2 + $0x170] sm:$0xff]
    %v86 = vld [vmem:[%s2 + $0x178] sm:$0xff]
    %v87 = vld [vmem:[%s2 + $0x180] sm:$0xff]
    %v88 = vld [vmem:[%s2 + $0x188] sm:$0xff]
    %v89 = vld [vmem:[%s2 + $0x190] sm:$0xff]
    %v90 = vld [vmem:[%s2 + $0x198] sm:$0xff]
    %v91 = vld [vmem:[%s2 + $0x1a0] sm:$0xff]
    %v92 = vld [vmem:[%s2 + $0x1a8] sm:$0xff]
    %v93 = vld [vmem:[%s2 + $0x1b0] sm:$0xff]
    %v94 = vld [vmem:[%s2 + $0x1b8] sm:$0xff]
    %v95 = vld [vmem:[%s2 + $0x1c0] sm:$0xff]
    %v96 = vld [vmem:[%s2 + $0x1c8] sm:$0xff]
    %v97 = vld [vmem:[%s2 + $0x1d0] sm:$0xff]
    %v98 = vld [vmem:[%s2 + $0x1d8] sm:$0xff]
    %v99 = vld [vmem:[%s2 + $0x1e0] sm:$0xff]
    %v100 = vld [vmem:[%s2 + $0x1e8] sm:$0xff]
    %v101 = vld [vmem:[%s2 + $0x1f0] sm:$0xff]
    %v102 = vld [vmem:[%s2 + $0x1f8] sm:$0xff]
    %v103 = vld [vmem:[%s2 + $0x200] sm:$0xff]
    %v104 = vld [vmem:[%s2 + $0x208] sm:$0xff]
    %v105 = vld [vmem:[%s2 + $0x210] sm:$0xff]
    %v106 = vld [vmem:[%s2 + $0x218] sm:$0xff]
    %v107 = vld [vmem:[%s2 + $0x220] sm:$0xff]
    %v108 = vld [vmem:[%s2 + $0x228] sm:$0xff]
    %v109 = vld [vmem:[%s2 + $0x230] sm:$0xff]
    %v110 = vld [vmem:[%s2 + $0x238] sm:$0xff]
    %v111 = vld [vmem:[%s2 + $0x240] sm:$0xff]
    %v112 = vld [vmem:[%s2 + $0x248] sm:$0xff]
    %v113 = vld [vmem:[%s2 + $0x250] sm:$0xff]
    %v114 = vld [vmem:[%s2 + $0x258] sm:$0xff]
    %v115 = vld [vmem:[%s2 + $0x260] sm:$0xff]
    %v116 = vld [vmem:[%s2 + $0x268] sm:$0xff]
    %v117 = vld [vmem:[%s2 + $0x270] sm:$0xff]
    %v118 = vld [vmem:[%s2 + $0x278] sm:$0xff]
    %v119 = vld [vmem:[%s2 + $0x280] sm:$0xff]
    %v120 = vld [vmem:[%s2 + $0x288] sm:$0xff]
    %v121 = vld [vmem:[%s2 + $0x290] sm:$0xff]
    %v122 = vld [vmem:[%s2 + $0x298] sm:$0xff]
    %v123 = vld [vmem:[%s2 + $0x2a0] sm:$0xff]
    %v124 = vld [vmem:[%s2 + $0x2a8] sm:$0xff]
    %v125 = vld [vmem:[%s2 + $0x2b0] sm:$0xff]
    %v126 = vld [vmem:[%s2 + $0x2b8] sm:$0xff]
    %v127 = vld [vmem:[%s2 + $0x2c0] sm:$0xff]
    %v128 = vld [vmem:[%s2 + $0x2c8] sm:$0xff]
    %v129 = vld [vmem:[%s2 + $0x2d0] sm:$0xff]
    %v130 = vld [vmem:[%s2 + $0x2d8] sm:$0xff]
    %v131 = vld [vmem:[%s2 + $0x2e0] sm:$0xff]
    %v132 = vld [vmem:[%s2 + $0x2e8] sm:$0xff]
    %v133 = vld [vmem:[%s2 + $0x2f0] sm:$0xff]
    %v134 = vld [vmem:[%s2 + $0x2f8] sm:$0xff]
    %v135 = vld [vmem:[%s2 + $0x300] sm:$0xff]
    %v136 = vld [vmem:[%s2 + $0x308] sm:$0xff]
    %v137 = vld [vmem:[%s2 + $0x310] sm:$0xff]
    %v138 = vld [vmem:[%s2 + $0x318] sm:$0xff]
    %v139 = vld [vmem:[%s2 + $0x320] sm:$0xff]
    %v140 = vld [vmem:[%s2 + $0x328] sm:$0xff]
    %v141 = vld [vmem:[%s2 + $0x330] sm:$0xff]
    %v142 = vld [vmem:[%s2 + $0x338] sm:$0xff]
    %v143 = vld [vmem:[%s2 + $0x340] sm:$0xff]
    %v144 = vld [vmem:[%s2 + $0x348] sm:$0xff]
    %v145 = vld [vmem:[%s2 + $0x350] sm:$0xff]
    %v146 = vld [vmem:[%s2 + $0x358] sm:$0xff]
    %v147 = vld [vmem:[%s2 + $0x360] sm:$0xff]
    %v148 = vld [vmem:[%s2 + $0x368] sm:$0xff]
    %v149 = vld [vmem:[%s2 + $0x370] sm:$0xff]
    %v150 = vld [vmem:[%s2 + $0x378] sm:$0xff]
    %v151 = vld [vmem:[%s2 + $0x380] sm:$0xff]
    %v152 = vld [vmem:[%s2 + $0x388] sm:$0xff]
    %v153 = vld [vmem:[%s2 + $0x390] sm:$0xff]
    %v154 = vld [vmem:[%s2 + $0x398] sm:$0xff]
    %v155 = vld [vmem:[%s2 + $0x3a0] sm:$0xff]
    %v156 = vld [vmem:[%s2 + $0x3a8] sm:$0xff]
    %v157 = vld [vmem:[%s2 + $0x3b0] sm:$0xff]
    %v158 = vld [vmem:[%s2 + $0x3b8] sm:$0xff]
    %v159 = vld [vmem:[%s2 + $0x3c0] sm:$0xff]
    %v160 = vld [vmem:[%s2 + $0x3c8] sm:$0xff]
    %v161 = vld [vmem:[%s2 + $0x3d0] sm:$0xff]
    %v162 = vld [vmem:[%s2 + $0x3d8] sm:$0xff]
    %v163 = vld [vmem:[%s2 + $0x3e0] sm:$0xff]
    %v164 = vld [vmem:[%s2 + $0x3e8] sm:$0xff]
    %v165 = vld [vmem:[%s2 + $0x3f0] sm:$0xff]
    %v166 = vld [vmem:[%s2 + $0x3f8] sm:$0xff]
    %v167 = vld [vmem:[%s1] sm:$0x3]
    %v168 = vld [vmem:[#allocation2] sm:$0xff]
    %v169 = vld [vmem:[#allocation2 + $0x8] sm:$0xff]
    %v170 = vld [vmem:[#allocation2 + $0x10] sm:$0xff]
    %v171 = vld [vmem:[#allocation2 + $0x18] sm:$0xff]
    %v172 = vld [vmem:[#allocation2 + $0x20] sm:$0xff]
    %v173 = vld [vmem:[#allocation2 + $0x28] sm:$0xff]
    %v174 = vld [vmem:[#allocation2 + $0x30] sm:$0xff]
    %v175 = vld [vmem:[#allocation2 + $0x38] sm:$0xff]
    %v176 = vld [vmem:[#allocation2 + $0x40] sm:$0xff]
    %v177 = vld [vmem:[#allocation2 + $0x48] sm:$0xff]
    %v178 = vld [vmem:[#allocation2 + $0x50] sm:$0xff]
    %v179 = vld [vmem:[#allocation2 + $0x58] sm:$0xff]
    %v180 = vld [vmem:[#allocation2 + $0x60] sm:$0xff]
    %v181 = vld [vmem:[#allocation2 + $0x68] sm:$0xff]
    %v182 = vld [vmem:[#allocation2 + $0x70] sm:$0xff]
    %v183 = vld [vmem:[#allocation2 + $0x78] sm:$0xff]
    %vm184 = vcmask 130048
    %v186 = vsel %vm184, %v167, 0
    %188 = vmatprep.subr.mxu0 0.0
    %189 = vmatpush1.msra.mxu0 0.0
    %190 = vmatprep.subr.mxu0 0.0
    %191 = vmatpush1.msra.mxu0 0.0
    %192 = vmatprep.subr.mxu0 0.0
    %193 = vmatpush1.msra.mxu0 0.0
    %194 = vmatprep.subr.mxu0 0.0
    %195 = vmatpush1.msra.mxu0 0.0
    %196 = vmatprep.subr.mxu0 0.0
    %197 = vmatpush1.msra.mxu0 0.0
    %198 = vmatprep.subr.mxu0 0.0
    %199 = vmatpush1.msra.mxu0 0.0
    %200 = vmatprep.subr.mxu0 0.0
    %201 = vmatpush1.msra.mxu0 0.0
    %202 = vmatprep.subr.mxu0 0.0
    %203 = vmatpush1.msra.mxu0 0.0
    %204 = vmatprep.subr.mxu0 0.0
    %205 = vmatpush1.msra.mxu0 0.0
    %206 = vmatprep.subr.mxu0 0.0
    %207 = vmatpush1.msra.mxu0 0.0
    %208 = vmatprep.subr.mxu0 0.0
    %209 = vmatpush1.msra.mxu0 0.0
    %210 = vmatprep.subr.mxu0 0.0
    %211 = vmatpush1.msra.mxu0 0.0
    %212 = vmatprep.subr.mxu0 0.0
    %213 = vmatpush1.msra.mxu0 0.0
    %214 = vmatprep.subr.mxu0 0.0
    %215 = vmatpush1.msra.mxu0 0.0
    %216 = vmatprep.subr.mxu0 %v177
    %217 = vmatpush1.msra.mxu0 %v176
    %218 = vmatprep.subr.mxu0 %v169
    %219 = vmatpush1.msra.mxu0 %v168
    %220 = vmatprep.subr.mxu0 0.0
    %221 = vmatpush2.msra.mxu0 0.0
    %222 = vmatprep.subr.mxu0 0.0
    %223 = vmatpush2.msra.mxu0 0.0
    %224 = vmatprep.subr.mxu0 0.0
    %225 = vmatpush2.msra.mxu0 0.0
    %226 = vmatprep.subr.mxu0 0.0
    %227 = vmatpush2.msra.mxu0 0.0
    %228 = vmatprep.subr.mxu0 0.0
    %229 = vmatpush2.msra.mxu0 0.0
    %230 = vmatprep.subr.mxu0 0.0
    %231 = vmatpush2.msra.mxu0 0.0
    %232 = vmatprep.subr.mxu0 0.0
    %233 = vmatpush2.msra.mxu0 0.0
    %234 = vmatprep.subr.mxu0 0.0
    %235 = vmatpush2.msra.mxu0 0.0
    %236 = vmatprep.subr.mxu0 0.0
    %237 = vmatpush2.msra.mxu0 0.0
    %238 = vmatprep.subr.mxu0 0.0
    %239 = vmatpush2.msra.mxu0 0.0
    %240 = vmatprep.subr.mxu0 0.0
    %241 = vmatpush2.msra.mxu0 0.0
    %242 = vmatprep.subr.mxu0 0.0
    %243 = vmatpush2.msra.mxu0 0.0
    %244 = vmatprep.subr.mxu0 0.0
    %245 = vmatpush2.msra.mxu0 0.0
    %246 = vmatprep.subr.mxu0 0.0
    %247 = vmatpush2.msra.mxu0 0.0
    %248 = vmatprep.subr.mxu0 0.0
    %249 = vmatpush2.msra.mxu0 0.0
    %250 = vmatprep.subr.mxu0 0.0
    %251 = vmatpush2.msra.mxu0 0.0
    %252 = vmatprep.mubr.f32.mxu0 0.0
    %253 = vmatmul.mubr.f32.gmra.mxu0 %v186
    %v254 = vpop.f32.mrf.mxu0
    %v255 = vadd.f32 0.0, %v254
    %v256 = vpop.f32.mrf.mxu0
    %v257 = vadd.f32 0.0, %v256
    %258 = vdwg.mxu0
    %259 = vmatprep.subr.mxu0 0.0
    %260 = vmatpush1.msra.mxu0 0.0
    %261 = vmatprep.subr.mxu0 0.0
    %262 = vmatpush1.msra.mxu0 0.0
    %263 = vmatprep.subr.mxu0 0.0
    %264 = vmatpush1.msra.mxu0 0.0
    %265 = vmatprep.subr.mxu0 0.0
    %266 = vmatpush1.msra.mxu0 0.0
    %267 = vmatprep.subr.mxu0 0.0
    %268 = vmatpush1.msra.mxu0 0.0
    %269 = vmatprep.subr.mxu0 0.0
    %270 = vmatpush1.msra.mxu0 0.0
    %271 = vmatprep.subr.mxu0 0.0
    %272 = vmatpush1.msra.mxu0 0.0
    %273 = vmatprep.subr.mxu0 0.0
    %274 = vmatpush1.msra.mxu0 0.0
    %275 = vmatprep.subr.mxu0 0.0
    %276 = vmatpush1.msra.mxu0 0.0
    %277 = vmatprep.subr.mxu0 0.0
    %278 = vmatpush1.msra.mxu0 0.0
    %279 = vmatprep.subr.mxu0 0.0
    %280 = vmatpush1.msra.mxu0 0.0
    %281 = vmatprep.subr.mxu0 0.0
    %282 = vmatpush1.msra.mxu0 0.0
    %283 = vmatprep.subr.mxu0 0.0
    %284 = vmatpush1.msra.mxu0 0.0
    %285 = vmatprep.subr.mxu0 0.0
    %286 = vmatpush1.msra.mxu0 0.0
    %287 = vmatprep.subr.mxu0 %v179
    %288 = vmatpush1.msra.mxu0 %v178
    %289 = vmatprep.subr.mxu0 %v171
    %290 = vmatpush1.msra.mxu0 %v170
    %291 = vmatprep.subr.mxu0 0.0
    %292 = vmatpush2.msra.mxu0 0.0
    %293 = vmatprep.subr.mxu0 0.0
    %294 = vmatpush2.msra.mxu0 0.0
    %295 = vmatprep.subr.mxu0 0.0
    %296 = vmatpush2.msra.mxu0 0.0
    %297 = vmatprep.subr.mxu0 0.0
    %298 = vmatpush2.msra.mxu0 0.0
    %299 = vmatprep.subr.mxu0 0.0
    %300 = vmatpush2.msra.mxu0 0.0
    %301 = vmatprep.subr.mxu0 0.0
    %302 = vmatpush2.msra.mxu0 0.0
    %303 = vmatprep.subr.mxu0 0.0
    %304 = vmatpush2.msra.mxu0 0.0
    %305 = vmatprep.subr.mxu0 0.0
    %306 = vmatpush2.msra.mxu0 0.0
    %307 = vmatprep.subr.mxu0 0.0
    %308 = vmatpush2.msra.mxu0 0.0
    %309 = vmatprep.subr.mxu0 0.0
    %310 = vmatpush2.msra.mxu0 0.0
    %311 = vmatprep.subr.mxu0 0.0
    %312 = vmatpush2.msra.mxu0 0.0
    %313 = vmatprep.subr.mxu0 0.0
    %314 = vmatpush2.msra.mxu0 0.0
    %315 = vmatprep.subr.mxu0 0.0
    %316 = vmatpush2.msra.mxu0 0.0
    %317 = vmatprep.subr.mxu0 0.0
    %318 = vmatpush2.msra.mxu0 0.0
    %319 = vmatprep.subr.mxu0 0.0
    %320 = vmatpush2.msra.mxu0 0.0
    %321 = vmatprep.subr.mxu0 0.0
    %322 = vmatpush2.msra.mxu0 0.0
    %323 = vmatprep.mubr.f32.mxu0 0.0
    %324 = vmatmul.mubr.f32.gmra.mxu0 %v186
    %v325 = vpop.f32.mrf.mxu0
    %v326 = vadd.f32 0.0, %v325
    %v327 = vpop.f32.mrf.mxu0
    %v328 = vadd.f32 0.0, %v327
    %329 = vdwg.mxu0
    %330 = vmatprep.subr.mxu0 0.0
    %331 = vmatpush1.msra.mxu0 0.0
    %332 = vmatprep.subr.mxu0 0.0
    %333 = vmatpush1.msra.mxu0 0.0
    %334 = vmatprep.subr.mxu0 0.0
    %335 = vmatpush1.msra.mxu0 0.0
    %336 = vmatprep.subr.mxu0 0.0
    %337 = vmatpush1.msra.mxu0 0.0
    %338 = vmatprep.subr.mxu0 0.0
    %339 = vmatpush1.msra.mxu0 0.0
    %340 = vmatprep.subr.mxu0 0.0
    %341 = vmatpush1.msra.mxu0 0.0
    %342 = vmatprep.subr.mxu0 0.0
    %343 = vmatpush1.msra.mxu0 0.0
    %344 = vmatprep.subr.mxu0 0.0
    %345 = vmatpush1.msra.mxu0 0.0
    %346 = vmatprep.subr.mxu0 0.0
    %347 = vmatpush1.msra.mxu0 0.0
    %348 = vmatprep.subr.mxu0 0.0
    %349 = vmatpush1.msra.mxu0 0.0
    %350 = vmatprep.subr.mxu0 0.0
    %351 = vmatpush1.msra.mxu0 0.0
    %352 = vmatprep.subr.mxu0 0.0
    %353 = vmatpush1.msra.mxu0 0.0
    %354 = vmatprep.subr.mxu0 0.0
    %355 = vmatpush1.msra.mxu0 0.0
    %356 = vmatprep.subr.mxu0 0.0
    %357 = vmatpush1.msra.mxu0 0.0
    %358 = vmatprep.subr.mxu0 %v181
    %359 = vmatpush1.msra.mxu0 %v180
    %360 = vmatprep.subr.mxu0 %v173
    %361 = vmatpush1.msra.mxu0 %v172
    %362 = vmatprep.subr.mxu0 0.0
    %363 = vmatpush2.msra.mxu0 0.0
    %364 = vmatprep.subr.mxu0 0.0
    %365 = vmatpush2.msra.mxu0 0.0
    %366 = vmatprep.subr.mxu0 0.0
    %367 = vmatpush2.msra.mxu0 0.0
    %368 = vmatprep.subr.mxu0 0.0
    %369 = vmatpush2.msra.mxu0 0.0
    %370 = vmatprep.subr.mxu0 0.0
    %371 = vmatpush2.msra.mxu0 0.0
    %372 = vmatprep.subr.mxu0 0.0
    %373 = vmatpush2.msra.mxu0 0.0
    %374 = vmatprep.subr.mxu0 0.0
    %375 = vmatpush2.msra.mxu0 0.0
    %376 = vmatprep.subr.mxu0 0.0
    %377 = vmatpush2.msra.mxu0 0.0
    %378 = vmatprep.subr.mxu0 0.0
    %379 = vmatpush2.msra.mxu0 0.0
    %380 = vmatprep.subr.mxu0 0.0
    %381 = vmatpush2.msra.mxu0 0.0
    %382 = vmatprep.subr.mxu0 0.0
    %383 = vmatpush2.msra.mxu0 0.0
    %384 = vmatprep.subr.mxu0 0.0
    %385 = vmatpush2.msra.mxu0 0.0
    %386 = vmatprep.subr.mxu0 0.0
    %387 = vmatpush2.msra.mxu0 0.0
    %388 = vmatprep.subr.mxu0 0.0
    %389 = vmatpush2.msra.mxu0 0.0
    %390 = vmatprep.subr.mxu0 0.0
    %391 = vmatpush2.msra.mxu0 0.0
    %392 = vmatprep.subr.mxu0 0.0
    %393 = vmatpush2.msra.mxu0 0.0
    %394 = vmatprep.mubr.f32.mxu0 0.0
    %395 = vmatmul.mubr.f32.gmra.mxu0 %v186
    %v396 = vpop.f32.mrf.mxu0
    %v397 = vadd.f32 0.0, %v396
    %v398 = vpop.f32.mrf.mxu0
    %v399 = vadd.f32 0.0, %v398
    %400 = vdwg.mxu0
    %401 = vmatprep.subr.mxu0 0.0
    %402 = vmatpush1.msra.mxu0 0.0
    %403 = vmatprep.subr.mxu0 0.0
    %404 = vmatpush1.msra.mxu0 0.0
    %405 = vmatprep.subr.mxu0 0.0
    %406 = vmatpush1.msra.mxu0 0.0
    %407 = vmatprep.subr.mxu0 0.0
    %408 = vmatpush1.msra.mxu0 0.0
    %409 = vmatprep.subr.mxu0 0.0
    %410 = vmatpush1.msra.mxu0 0.0
    %411 = vmatprep.subr.mxu0 0.0
    %412 = vmatpush1.msra.mxu0 0.0
    %413 = vmatprep.subr.mxu0 0.0
    %414 = vmatpush1.msra.mxu0 0.0
    %415 = vmatprep.subr.mxu0 0.0
    %416 = vmatpush1.msra.mxu0 0.0
    %417 = vmatprep.subr.mxu0 0.0
    %418 = vmatpush1.msra.mxu0 0.0
    %419 = vmatprep.subr.mxu0 0.0
    %420 = vmatpush1.msra.mxu0 0.0
    %421 = vmatprep.subr.mxu0 0.0
    %422 = vmatpush1.msra.mxu0 0.0
    %423 = vmatprep.subr.mxu0 0.0
    %424 = vmatpush1.msra.mxu0 0.0
    %425 = vmatprep.subr.mxu0 0.0
    %426 = vmatpush1.msra.mxu0 0.0
    %427 = vmatprep.subr.mxu0 0.0
    %428 = vmatpush1.msra.mxu0 0.0
    %429 = vmatprep.subr.mxu0 %v183
    %430 = vmatpush1.msra.mxu0 %v182
    %431 = vmatprep.subr.mxu0 %v175
    %432 = vmatpush1.msra.mxu0 %v174
    %433 = vmatprep.subr.mxu0 0.0
    %434 = vmatpush2.msra.mxu0 0.0
    %435 = vmatprep.subr.mxu0 0.0
    %436 = vmatpush2.msra.mxu0 0.0
    %437 = vmatprep.subr.mxu0 0.0
    %438 = vmatpush2.msra.mxu0 0.0
    %439 = vmatprep.subr.mxu0 0.0
    %440 = vmatpush2.msra.mxu0 0.0
    %441 = vmatprep.subr.mxu0 0.0
    %442 = vmatpush2.msra.mxu0 0.0
    %443 = vmatprep.subr.mxu0 0.0
    %444 = vmatpush2.msra.mxu0 0.0
    %445 = vmatprep.subr.mxu0 0.0
    %446 = vmatpush2.msra.mxu0 0.0
    %447 = vmatprep.subr.mxu0 0.0
    %448 = vmatpush2.msra.mxu0 0.0
    %449 = vmatprep.subr.mxu0 0.0
    %450 = vmatpush2.msra.mxu0 0.0
    %451 = vmatprep.subr.mxu0 0.0
    %452 = vmatpush2.msra.mxu0 0.0
    %453 = vmatprep.subr.mxu0 0.0
    %454 = vmatpush2.msra.mxu0 0.0
    %455 = vmatprep.subr.mxu0 0.0
    %456 = vmatpush2.msra.mxu0 0.0
    %457 = vmatprep.subr.mxu0 0.0
    %458 = vmatpush2.msra.mxu0 0.0
    %459 = vmatprep.subr.mxu0 0.0
    %460 = vmatpush2.msra.mxu0 0.0
    %461 = vmatprep.subr.mxu0 0.0
    %462 = vmatpush2.msra.mxu0 0.0
    %463 = vmatprep.subr.mxu0 0.0
    %464 = vmatpush2.msra.mxu0 0.0
    %465 = vmatprep.mubr.f32.mxu0 0.0
    %466 = vmatmul.mubr.f32.gmra.mxu0 %v186
    %v467 = vpop.f32.mrf.mxu0
    %v468 = vadd.f32 0.0, %v467
    %v469 = vpop.f32.mrf.mxu0
    %v470 = vadd.f32 0.0, %v469
    %471 = vdwg.mxu0
    %472 = vmatprep.subr.mxu0 %v160
    %473 = vmatpush1.msra.mxu0 %v159
    %474 = vmatprep.subr.mxu0 %v152
    %475 = vmatpush1.msra.mxu0 %v151
    %476 = vmatprep.subr.mxu0 %v144
    %477 = vmatpush1.msra.mxu0 %v143
    %478 = vmatprep.subr.mxu0 %v136
    %479 = vmatpush1.msra.mxu0 %v135
    %480 = vmatprep.subr.mxu0 %v128
    %481 = vmatpush1.msra.mxu0 %v127
    %482 = vmatprep.subr.mxu0 %v120
    %483 = vmatpush1.msra.mxu0 %v119
    %484 = vmatprep.subr.mxu0 %v112
    %485 = vmatpush1.msra.mxu0 %v111
    %486 = vmatprep.subr.mxu0 %v104
    %487 = vmatpush1.msra.mxu0 %v103
    %488 = vmatprep.subr.mxu0 %v96
    %489 = vmatpush1.msra.mxu0 %v95
    %490 = vmatprep.subr.mxu0 %v88
    %491 = vmatpush1.msra.mxu0 %v87
    %492 = vmatprep.subr.mxu0 %v80
    %493 = vmatpush1.msra.mxu0 %v79
    %494 = vmatprep.subr.mxu0 %v72
    %495 = vmatpush1.msra.mxu0 %v71
    %496 = vmatprep.subr.mxu0 %v64
    %497 = vmatpush1.msra.mxu0 %v63
    %498 = vmatprep.subr.mxu0 %v56
    %499 = vmatpush1.msra.mxu0 %v55
    %500 = vmatprep.subr.mxu0 %v48
    %501 = vmatpush1.msra.mxu0 %v47
    %502 = vmatprep.subr.mxu0 %v40
    %503 = vmatpush1.msra.mxu0 %v39
    %504 = vmatprep.subr.mxu0 0.0
    %505 = vmatpush2.msra.mxu0 0.0
    %506 = vmatprep.subr.mxu0 0.0
    %507 = vmatpush2.msra.mxu0 0.0
    %508 = vmatprep.subr.mxu0 0.0
    %509 = vmatpush2.msra.mxu0 0.0
    %510 = vmatprep.subr.mxu0 0.0
    %511 = vmatpush2.msra.mxu0 0.0
    %512 = vmatprep.subr.mxu0 0.0
    %513 = vmatpush2.msra.mxu0 0.0
    %514 = vmatprep.subr.mxu0 0.0
    %515 = vmatpush2.msra.mxu0 0.0
    %516 = vmatprep.subr.mxu0 0.0
    %517 = vmatpush2.msra.mxu0 0.0
    %518 = vmatprep.subr.mxu0 0.0
    %519 = vmatpush2.msra.mxu0 0.0
    %520 = vmatprep.subr.mxu0 0.0
    %521 = vmatpush2.msra.mxu0 0.0
    %522 = vmatprep.subr.mxu0 0.0
    %523 = vmatpush2.msra.mxu0 0.0
    %524 = vmatprep.subr.mxu0 0.0
    %525 = vmatpush2.msra.mxu0 0.0
    %526 = vmatprep.subr.mxu0 0.0
    %527 = vmatpush2.msra.mxu0 0.0
    %528 = vmatprep.subr.mxu0 0.0
    %529 = vmatpush2.msra.mxu0 0.0
    %530 = vmatprep.subr.mxu0 0.0
    %531 = vmatpush2.msra.mxu0 0.0
    %532 = vmatprep.subr.mxu0 0.0
    %533 = vmatpush2.msra.mxu0 0.0
    %534 = vmatprep.subr.mxu0 0.0
    %535 = vmatpush2.msra.mxu0 0.0
    %536 = vmatprep.mubr.f32.mxu0 0.0
    %537 = vmatmul.mubr.f32.gmra.mxu0 %v38
    %v538 = vpop.f32.mrf.mxu0
    %v539 = vadd.f32 %v255, %v538
    %v540 = vpop.f32.mrf.mxu0
    %v541 = vadd.f32 %v257, %v540
    %542 = vdwg.mxu0
    %543 = vmatprep.subr.mxu0 %v162
    %544 = vmatpush1.msra.mxu0 %v161
    %545 = vmatprep.subr.mxu0 %v154
    %546 = vmatpush1.msra.mxu0 %v153
    %547 = vmatprep.subr.mxu0 %v146
    %548 = vmatpush1.msra.mxu0 %v145
    %549 = vmatprep.subr.mxu0 %v138
    %550 = vmatpush1.msra.mxu0 %v137
    %551 = vmatprep.subr.mxu0 %v130
    %552 = vmatpush1.msra.mxu0 %v129
    %553 = vmatprep.subr.mxu0 %v122
    %554 = vmatpush1.msra.mxu0 %v121
    %555 = vmatprep.subr.mxu0 %v114
    %556 = vmatpush1.msra.mxu0 %v113
    %557 = vmatprep.subr.mxu0 %v106
    %558 = vmatpush1.msra.mxu0 %v105
    %559 = vmatprep.subr.mxu0 %v98
    %560 = vmatpush1.msra.mxu0 %v97
    %561 = vmatprep.subr.mxu0 %v90
    %562 = vmatpush1.msra.mxu0 %v89
    %563 = vmatprep.subr.mxu0 %v82
    %564 = vmatpush1.msra.mxu0 %v81
    %565 = vmatprep.subr.mxu0 %v74
    %566 = vmatpush1.msra.mxu0 %v73
    %567 = vmatprep.subr.mxu0 %v66
    %568 = vmatpush1.msra.mxu0 %v65
    %569 = vmatprep.subr.mxu0 %v58
    %570 = vmatpush1.msra.mxu0 %v57
    %571 = vmatprep.subr.mxu0 %v50
    %572 = vmatpush1.msra.mxu0 %v49
    %573 = vmatprep.subr.mxu0 %v42
    %574 = vmatpush1.msra.mxu0 %v41
    %575 = vmatprep.subr.mxu0 0.0
    %576 = vmatpush2.msra.mxu0 0.0
    %577 = vmatprep.subr.mxu0 0.0
    %578 = vmatpush2.msra.mxu0 0.0
    %579 = vmatprep.subr.mxu0 0.0
    %580 = vmatpush2.msra.mxu0 0.0
    %581 = vmatprep.subr.mxu0 0.0
    %582 = vmatpush2.msra.mxu0 0.0
    %583 = vmatprep.subr.mxu0 0.0
    %584 = vmatpush2.msra.mxu0 0.0
    %585 = vmatprep.subr.mxu0 0.0
    %586 = vmatpush2.msra.mxu0 0.0
    %587 = vmatprep.subr.mxu0 0.0
    %588 = vmatpush2.msra.mxu0 0.0
    %589 = vmatprep.subr.mxu0 0.0
    %590 = vmatpush2.msra.mxu0 0.0
    %591 = vmatprep.subr.mxu0 0.0
    %592 = vmatpush2.msra.mxu0 0.0
    %593 = vmatprep.subr.mxu0 0.0
    %594 = vmatpush2.msra.mxu0 0.0
    %595 = vmatprep.subr.mxu0 0.0
    %596 = vmatpush2.msra.mxu0 0.0
    %597 = vmatprep.subr.mxu0 0.0
    %598 = vmatpush2.msra.mxu0 0.0
    %599 = vmatprep.subr.mxu0 0.0
    %600 = vmatpush2.msra.mxu0 0.0
    %601 = vmatprep.subr.mxu0 0.0
    %602 = vmatpush2.msra.mxu0 0.0
    %603 = vmatprep.subr.mxu0 0.0
    %604 = vmatpush2.msra.mxu0 0.0
    %605 = vmatprep.subr.mxu0 0.0
    %606 = vmatpush2.msra.mxu0 0.0
    %607 = vmatprep.mubr.f32.mxu0 0.0
    %608 = vmatmul.mubr.f32.gmra.mxu0 %v38
    %v609 = vpop.f32.mrf.mxu0
    %v610 = vadd.f32 %v326, %v609
    %v611 = vpop.f32.mrf.mxu0
    %v612 = vadd.f32 %v328, %v611
    %613 = vdwg.mxu0
    %614 = vmatprep.subr.mxu0 %v164
    %615 = vmatpush1.msra.mxu0 %v163
    %616 = vmatprep.subr.mxu0 %v156
    %617 = vmatpush1.msra.mxu0 %v155
    %618 = vmatprep.subr.mxu0 %v148
    %619 = vmatpush1.msra.mxu0 %v147
    %620 = vmatprep.subr.mxu0 %v140
    %621 = vmatpush1.msra.mxu0 %v139
    %622 = vmatprep.subr.mxu0 %v132
    %623 = vmatpush1.msra.mxu0 %v131
    %624 = vmatprep.subr.mxu0 %v124
    %625 = vmatpush1.msra.mxu0 %v123
    %626 = vmatprep.subr.mxu0 %v116
    %627 = vmatpush1.msra.mxu0 %v115
    %628 = vmatprep.subr.mxu0 %v108
    %629 = vmatpush1.msra.mxu0 %v107
    %630 = vmatprep.subr.mxu0 %v100
    %631 = vmatpush1.msra.mxu0 %v99
    %632 = vmatprep.subr.mxu0 %v92
    %633 = vmatpush1.msra.mxu0 %v91
    %634 = vmatprep.subr.mxu0 %v84
    %635 = vmatpush1.msra.mxu0 %v83
    %636 = vmatprep.subr.mxu0 %v76
    %637 = vmatpush1.msra.mxu0 %v75
    %638 = vmatprep.subr.mxu0 %v68
    %639 = vmatpush1.msra.mxu0 %v67
    %640 = vmatprep.subr.mxu0 %v60
    %641 = vmatpush1.msra.mxu0 %v59
    %642 = vmatprep.subr.mxu0 %v52
    %643 = vmatpush1.msra.mxu0 %v51
    %644 = vmatprep.subr.mxu0 %v44
    %645 = vmatpush1.msra.mxu0 %v43
    %646 = vmatprep.subr.mxu0 0.0
    %647 = vmatpush2.msra.mxu0 0.0
    %648 = vmatprep.subr.mxu0 0.0
    %649 = vmatpush2.msra.mxu0 0.0
    %650 = vmatprep.subr.mxu0 0.0
    %651 = vmatpush2.msra.mxu0 0.0
    %652 = vmatprep.subr.mxu0 0.0
    %653 = vmatpush2.msra.mxu0 0.0
    %654 = vmatprep.subr.mxu0 0.0
    %655 = vmatpush2.msra.mxu0 0.0
    %656 = vmatprep.subr.mxu0 0.0
    %657 = vmatpush2.msra.mxu0 0.0
    %658 = vmatprep.subr.mxu0 0.0
    %659 = vmatpush2.msra.mxu0 0.0
    %660 = vmatprep.subr.mxu0 0.0
    %661 = vmatpush2.msra.mxu0 0.0
    %662 = vmatprep.subr.mxu0 0.0
    %663 = vmatpush2.msra.mxu0 0.0
    %664 = vmatprep.subr.mxu0 0.0
    %665 = vmatpush2.msra.mxu0 0.0
    %666 = vmatprep.subr.mxu0 0.0
    %667 = vmatpush2.msra.mxu0 0.0
    %668 = vmatprep.subr.mxu0 0.0
    %669 = vmatpush2.msra.mxu0 0.0
    %670 = vmatprep.subr.mxu0 0.0
    %671 = vmatpush2.msra.mxu0 0.0
    %672 = vmatprep.subr.mxu0 0.0
    %673 = vmatpush2.msra.mxu0 0.0
    %674 = vmatprep.subr.mxu0 0.0
    %675 = vmatpush2.msra.mxu0 0.0
    %676 = vmatprep.subr.mxu0 0.0
    %677 = vmatpush2.msra.mxu0 0.0
    %678 = vmatprep.mubr.f32.mxu0 0.0
    %679 = vmatmul.mubr.f32.gmra.mxu0 %v38
    %v680 = vpop.f32.mrf.mxu0
    %v681 = vadd.f32 %v397, %v680
    %v682 = vpop.f32.mrf.mxu0
    %v683 = vadd.f32 %v399, %v682
    %684 = vdwg.mxu0
    %685 = vmatprep.subr.mxu0 %v166
    %686 = vmatpush1.msra.mxu0 %v165
    %687 = vmatprep.subr.mxu0 %v158
    %688 = vmatpush1.msra.mxu0 %v157
    %689 = vmatprep.subr.mxu0 %v150
    %690 = vmatpush1.msra.mxu0 %v149
    %691 = vmatprep.subr.mxu0 %v142
    %692 = vmatpush1.msra.mxu0 %v141
    %693 = vmatprep.subr.mxu0 %v134
    %694 = vmatpush1.msra.mxu0 %v133
    %695 = vmatprep.subr.mxu0 %v126
    %696 = vmatpush1.msra.mxu0 %v125
    %697 = vmatprep.subr.mxu0 %v118
    %698 = vmatpush1.msra.mxu0 %v117
    %699 = vmatprep.subr.mxu0 %v110
    %700 = vmatpush1.msra.mxu0 %v109
    %701 = vmatprep.subr.mxu0 %v102
    %702 = vmatpush1.msra.mxu0 %v101
    %703 = vmatprep.subr.mxu0 %v94
    %704 = vmatpush1.msra.mxu0 %v93
    %705 = vmatprep.subr.mxu0 %v86
    %706 = vmatpush1.msra.mxu0 %v85
    %707 = vmatprep.subr.mxu0 %v78
    %708 = vmatpush1.msra.mxu0 %v77
    %709 = vmatprep.subr.mxu0 %v70
    %710 = vmatpush1.msra.mxu0 %v69
    %711 = vmatprep.subr.mxu0 %v62
    %712 = vmatpush1.msra.mxu0 %v61
    %713 = vmatprep.subr.mxu0 %v54
    %714 = vmatpush1.msra.mxu0 %v53
    %715 = vmatprep.subr.mxu0 %v46
    %716 = vmatpush1.msra.mxu0 %v45
    %717 = vmatprep.subr.mxu0 0.0
    %718 = vmatpush2.msra.mxu0 0.0
    %719 = vmatprep.subr.mxu0 0.0
    %720 = vmatpush2.msra.mxu0 0.0
    %721 = vmatprep.subr.mxu0 0.0
    %722 = vmatpush2.msra.mxu0 0.0
    %723 = vmatprep.subr.mxu0 0.0
    %724 = vmatpush2.msra.mxu0 0.0
    %725 = vmatprep.subr.mxu0 0.0
    %726 = vmatpush2.msra.mxu0 0.0
    %727 = vmatprep.subr.mxu0 0.0
    %728 = vmatpush2.msra.mxu0 0.0
    %729 = vmatprep.subr.mxu0 0.0
    %730 = vmatpush2.msra.mxu0 0.0
    %731 = vmatprep.subr.mxu0 0.0
    %732 = vmatpush2.msra.mxu0 0.0
    %733 = vmatprep.subr.mxu0 0.0
    %734 = vmatpush2.msra.mxu0 0.0
    %735 = vmatprep.subr.mxu0 0.0
    %736 = vmatpush2.msra.mxu0 0.0
    %737 = vmatprep.subr.mxu0 0.0
    %738 = vmatpush2.msra.mxu0 0.0
    %739 = vmatprep.subr.mxu0 0.0
    %740 = vmatpush2.msra.mxu0 0.0
    %741 = vmatprep.subr.mxu0 0.0
    %742 = vmatpush2.msra.mxu0 0.0
    %743 = vmatprep.subr.mxu0 0.0
    %744 = vmatpush2.msra.mxu0 0.0
    %745 = vmatprep.subr.mxu0 0.0
    %746 = vmatpush2.msra.mxu0 0.0
    %747 = vmatprep.subr.mxu0 0.0
    %748 = vmatpush2.msra.mxu0 0.0
    %749 = vmatprep.mubr.f32.mxu0 0.0
    %750 = vmatmul.mubr.f32.gmra.mxu0 %v38
    %v751 = vpop.f32.mrf.mxu0
    %v752 = vadd.f32 %v468, %v751
    %v753 = vpop.f32.mrf.mxu0
    %v754 = vadd.f32 %v470, %v753
    %755 = vdwg.mxu0
    %v756 = vld [vmem:[%s4] sm:$0xff]
    %v758 = vlaneseq
    %v759 = vshrl.u32 %v758, 7
    %v760 = vsub.s32 0, %v759
    %v761 = vrot.slane %v756, %v760
    %v762 = vlaneseq
    %v763 = vshrl.u32 %v762, 7
    %v764 = vsub.s32 1, %v763
    %v765 = vrot.slane %v756, %v764
    %v766 = vlaneseq
    %v767 = vshrl.u32 %v766, 7
    %v768 = vsub.s32 2, %v767
    %v769 = vrot.slane %v756, %v768
    %v770 = vlaneseq
    %v771 = vshrl.u32 %v770, 7
    %v772 = vsub.s32 3, %v771
    %v773 = vrot.slane %v756, %v772
    %v774 = vlaneseq
    %v775 = vshrl.u32 %v774, 7
    %v776 = vsub.s32 4, %v775
    %v777 = vrot.slane %v756, %v776
    %v778 = vlaneseq
    %v779 = vshrl.u32 %v778, 7
    %v780 = vsub.s32 5, %v779
    %v781 = vrot.slane %v756, %v780
    %v782 = vlaneseq
    %v783 = vshrl.u32 %v782, 7
    %v784 = vsub.s32 6, %v783
    %v785 = vrot.slane %v756, %v784
    %v786 = vlaneseq
    %v787 = vshrl.u32 %v786, 7
    %v788 = vsub.s32 7, %v787
    %v789 = vrot.slane %v756, %v788
    %v798 = vadd.f32 %v539, %v761
    %v799 = vadd.f32 %v541, %v765
    %v800 = vadd.f32 %v610, %v769
    %v801 = vadd.f32 %v612, %v773
    %v802 = vadd.f32 %v681, %v777
    %v803 = vadd.f32 %v683, %v781
    %v804 = vadd.f32 %v752, %v785
    %v805 = vadd.f32 %v754, %v789
    %v806 = vmax.f32 %v798, 0.0
    %v807 = vmax.f32 %v799, 0.0
    %v808 = vmax.f32 %v800, 0.0
    %v809 = vmax.f32 %v801, 0.0
    %v810 = vmax.f32 %v802, 0.0
    %v811 = vmax.f32 %v803, 0.0
    %v812 = vmax.f32 %v804, 0.0
    %v813 = vmax.f32 %v805, 0.0
    %v814 = vld [vmem:[%s5] sm:$0xff]
    %v815 = vld [vmem:[%s5 + $0x8] sm:$0xff]
    %v816 = vld [vmem:[%s5 + $0x10] sm:$0xff]
    %v817 = vld [vmem:[%s5 + $0x18] sm:$0xff]
    %v818 = vld [vmem:[%s5 + $0x20] sm:$0xff]
    %v819 = vld [vmem:[%s5 + $0x28] sm:$0xff]
    %v820 = vld [vmem:[%s5 + $0x30] sm:$0xff]
    %v821 = vld [vmem:[%s5 + $0x38] sm:$0xff]
    %v822 = vld [vmem:[%s5 + $0x40] sm:$0xff]
    %v823 = vld [vmem:[%s5 + $0x48] sm:$0xff]
    %v824 = vld [vmem:[%s5 + $0x50] sm:$0xff]
    %v825 = vld [vmem:[%s5 + $0x58] sm:$0xff]
    %v826 = vld [vmem:[%s5 + $0x60] sm:$0xff]
    %v827 = vld [vmem:[%s5 + $0x68] sm:$0xff]
    %v828 = vld [vmem:[%s5 + $0x70] sm:$0xff]
    %v829 = vld [vmem:[%s5 + $0x78] sm:$0xff]
    %v830 = vld [vmem:[%s5 + $0x80] sm:$0xff]
    %v831 = vld [vmem:[%s5 + $0x88] sm:$0xff]
    %v832 = vld [vmem:[%s5 + $0x90] sm:$0xff]
    %v833 = vld [vmem:[%s5 + $0x98] sm:$0xff]
    %v834 = vld [vmem:[%s5 + $0xa0] sm:$0xff]
    %v835 = vld [vmem:[%s5 + $0xa8] sm:$0xff]
    %v836 = vld [vmem:[%s5 + $0xb0] sm:$0xff]
    %v837 = vld [vmem:[%s5 + $0xb8] sm:$0xff]
    %v838 = vld [vmem:[%s5 + $0xc0] sm:$0xff]
    %v839 = vld [vmem:[%s5 + $0xc8] sm:$0xff]
    %v840 = vld [vmem:[%s5 + $0xd0] sm:$0xff]
    %v841 = vld [vmem:[%s5 + $0xd8] sm:$0xff]
    %v842 = vld [vmem:[%s5 + $0xe0] sm:$0xff]
    %v843 = vld [vmem:[%s5 + $0xe8] sm:$0xff]
    %v844 = vld [vmem:[%s5 + $0xf0] sm:$0xff]
    %v845 = vld [vmem:[%s5 + $0xf8] sm:$0xff]
    %v846 = vld [vmem:[%s5 + $0x100] sm:$0xff]
    %v847 = vld [vmem:[%s5 + $0x108] sm:$0xff]
    %v848 = vld [vmem:[%s5 + $0x110] sm:$0xff]
    %v849 = vld [vmem:[%s5 + $0x118] sm:$0xff]
    %v850 = vld [vmem:[%s5 + $0x120] sm:$0xff]
    %v851 = vld [vmem:[%s5 + $0x128] sm:$0xff]
    %v852 = vld [vmem:[%s5 + $0x130] sm:$0xff]
    %v853 = vld [vmem:[%s5 + $0x138] sm:$0xff]
    %v854 = vld [vmem:[%s5 + $0x140] sm:$0xff]
    %v855 = vld [vmem:[%s5 + $0x148] sm:$0xff]
    %v856 = vld [vmem:[%s5 + $0x150] sm:$0xff]
    %v857 = vld [vmem:[%s5 + $0x158] sm:$0xff]
    %v858 = vld [vmem:[%s5 + $0x160] sm:$0xff]
    %v859 = vld [vmem:[%s5 + $0x168] sm:$0xff]
    %v860 = vld [vmem:[%s5 + $0x170] sm:$0xff]
    %v861 = vld [vmem:[%s5 + $0x178] sm:$0xff]
    %v862 = vld [vmem:[%s5 + $0x180] sm:$0xff]
    %v863 = vld [vmem:[%s5 + $0x188] sm:$0xff]
    %v864 = vld [vmem:[%s5 + $0x190] sm:$0xff]
    %v865 = vld [vmem:[%s5 + $0x198] sm:$0xff]
    %v866 = vld [vmem:[%s5 + $0x1a0] sm:$0xff]
    %v867 = vld [vmem:[%s5 + $0x1a8] sm:$0xff]
    %v868 = vld [vmem:[%s5 + $0x1b0] sm:$0xff]
    %v869 = vld [vmem:[%s5 + $0x1b8] sm:$0xff]
    %v870 = vld [vmem:[%s5 + $0x1c0] sm:$0xff]
    %v871 = vld [vmem:[%s5 + $0x1c8] sm:$0xff]
    %v872 = vld [vmem:[%s5 + $0x1d0] sm:$0xff]
    %v873 = vld [vmem:[%s5 + $0x1d8] sm:$0xff]
    %v874 = vld [vmem:[%s5 + $0x1e0] sm:$0xff]
    %v875 = vld [vmem:[%s5 + $0x1e8] sm:$0xff]
    %v876 = vld [vmem:[%s5 + $0x1f0] sm:$0xff]
    %v877 = vld [vmem:[%s5 + $0x1f8] sm:$0xff]
    %v878 = vld [vmem:[%s5 + $0x200] sm:$0xff]
    %v879 = vld [vmem:[%s5 + $0x208] sm:$0xff]
    %v880 = vld [vmem:[%s5 + $0x210] sm:$0xff]
    %v881 = vld [vmem:[%s5 + $0x218] sm:$0xff]
    %v882 = vld [vmem:[%s5 + $0x220] sm:$0xff]
    %v883 = vld [vmem:[%s5 + $0x228] sm:$0xff]
    %v884 = vld [vmem:[%s5 + $0x230] sm:$0xff]
    %v885 = vld [vmem:[%s5 + $0x238] sm:$0xff]
    %v886 = vld [vmem:[%s5 + $0x240] sm:$0xff]
    %v887 = vld [vmem:[%s5 + $0x248] sm:$0xff]
    %v888 = vld [vmem:[%s5 + $0x250] sm:$0xff]
    %v889 = vld [vmem:[%s5 + $0x258] sm:$0xff]
    %v890 = vld [vmem:[%s5 + $0x260] sm:$0xff]
    %v891 = vld [vmem:[%s5 + $0x268] sm:$0xff]
    %v892 = vld [vmem:[%s5 + $0x270] sm:$0xff]
    %v893 = vld [vmem:[%s5 + $0x278] sm:$0xff]
    %v894 = vld [vmem:[%s5 + $0x280] sm:$0xff]
    %v895 = vld [vmem:[%s5 + $0x288] sm:$0xff]
    %v896 = vld [vmem:[%s5 + $0x290] sm:$0xff]
    %v897 = vld [vmem:[%s5 + $0x298] sm:$0xff]
    %v898 = vld [vmem:[%s5 + $0x2a0] sm:$0xff]
    %v899 = vld [vmem:[%s5 + $0x2a8] sm:$0xff]
    %v900 = vld [vmem:[%s5 + $0x2b0] sm:$0xff]
    %v901 = vld [vmem:[%s5 + $0x2b8] sm:$0xff]
    %v902 = vld [vmem:[%s5 + $0x2c0] sm:$0xff]
    %v903 = vld [vmem:[%s5 + $0x2c8] sm:$0xff]
    %v904 = vld [vmem:[%s5 + $0x2d0] sm:$0xff]
    %v905 = vld [vmem:[%s5 + $0x2d8] sm:$0xff]
    %v906 = vld [vmem:[%s5 + $0x2e0] sm:$0xff]
    %v907 = vld [vmem:[%s5 + $0x2e8] sm:$0xff]
    %v908 = vld [vmem:[%s5 + $0x2f0] sm:$0xff]
    %v909 = vld [vmem:[%s5 + $0x2f8] sm:$0xff]
    %v910 = vld [vmem:[%s5 + $0x300] sm:$0xff]
    %v911 = vld [vmem:[%s5 + $0x308] sm:$0xff]
    %v912 = vld [vmem:[%s5 + $0x310] sm:$0xff]
    %v913 = vld [vmem:[%s5 + $0x318] sm:$0xff]
    %v914 = vld [vmem:[%s5 + $0x320] sm:$0xff]
    %v915 = vld [vmem:[%s5 + $0x328] sm:$0xff]
    %v916 = vld [vmem:[%s5 + $0x330] sm:$0xff]
    %v917 = vld [vmem:[%s5 + $0x338] sm:$0xff]
    %v918 = vld [vmem:[%s5 + $0x340] sm:$0xff]
    %v919 = vld [vmem:[%s5 + $0x348] sm:$0xff]
    %v920 = vld [vmem:[%s5 + $0x350] sm:$0xff]
    %v921 = vld [vmem:[%s5 + $0x358] sm:$0xff]
    %v922 = vld [vmem:[%s5 + $0x360] sm:$0xff]
    %v923 = vld [vmem:[%s5 + $0x368] sm:$0xff]
    %v924 = vld [vmem:[%s5 + $0x370] sm:$0xff]
    %v925 = vld [vmem:[%s5 + $0x378] sm:$0xff]
    %v926 = vld [vmem:[%s5 + $0x380] sm:$0xff]
    %v927 = vld [vmem:[%s5 + $0x388] sm:$0xff]
    %v928 = vld [vmem:[%s5 + $0x390] sm:$0xff]
    %v929 = vld [vmem:[%s5 + $0x398] sm:$0xff]
    %v930 = vld [vmem:[%s5 + $0x3a0] sm:$0xff]
    %v931 = vld [vmem:[%s5 + $0x3a8] sm:$0xff]
    %v932 = vld [vmem:[%s5 + $0x3b0] sm:$0xff]
    %v933 = vld [vmem:[%s5 + $0x3b8] sm:$0xff]
    %v934 = vld [vmem:[%s5 + $0x3c0] sm:$0xff]
    %v935 = vld [vmem:[%s5 + $0x3c8] sm:$0xff]
    %v936 = vld [vmem:[%s5 + $0x3d0] sm:$0xff]
    %v937 = vld [vmem:[%s5 + $0x3d8] sm:$0xff]
    %v938 = vld [vmem:[%s5 + $0x3e0] sm:$0xff]
    %v939 = vld [vmem:[%s5 + $0x3e8] sm:$0xff]
    %v940 = vld [vmem:[%s5 + $0x3f0] sm:$0xff]
    %v941 = vld [vmem:[%s5 + $0x3f8] sm:$0xff]
    %942 = vmatprep.subr.mxu0 0.0
    %943 = vmatpush1.msra.mxu0 %v829
    %944 = vmatprep.subr.mxu0 0.0
    %945 = vmatpush1.msra.mxu0 %v828
    %946 = vmatprep.subr.mxu0 0.0
    %947 = vmatpush1.msra.mxu0 %v827
    %948 = vmatprep.subr.mxu0 0.0
    %949 = vmatpush1.msra.mxu0 %v826
    %950 = vmatprep.subr.mxu0 0.0
    %951 = vmatpush1.msra.mxu0 %v825
    %952 = vmatprep.subr.mxu0 0.0
    %953 = vmatpush1.msra.mxu0 %v824
    %954 = vmatprep.subr.mxu0 0.0
    %955 = vmatpush1.msra.mxu0 %v823
    %956 = vmatprep.subr.mxu0 0.0
    %957 = vmatpush1.msra.mxu0 %v822
    %958 = vmatprep.subr.mxu0 0.0
    %959 = vmatpush1.msra.mxu0 %v821
    %960 = vmatprep.subr.mxu0 0.0
    %961 = vmatpush1.msra.mxu0 %v820
    %962 = vmatprep.subr.mxu0 0.0
    %963 = vmatpush1.msra.mxu0 %v819
    %964 = vmatprep.subr.mxu0 0.0
    %965 = vmatpush1.msra.mxu0 %v818
    %966 = vmatprep.subr.mxu0 0.0
    %967 = vmatpush1.msra.mxu0 %v817
    %968 = vmatprep.subr.mxu0 0.0
    %969 = vmatpush1.msra.mxu0 %v816
    %970 = vmatprep.subr.mxu0 0.0
    %971 = vmatpush1.msra.mxu0 %v815
    %972 = vmatprep.subr.mxu0 0.0
    %973 = vmatpush1.msra.mxu0 %v814
    %974 = vmatprep.subr.mxu0 0.0
    %975 = vmatpush2.msra.mxu0 %v845
    %976 = vmatprep.subr.mxu0 0.0
    %977 = vmatpush2.msra.mxu0 %v844
    %978 = vmatprep.subr.mxu0 0.0
    %979 = vmatpush2.msra.mxu0 %v843
    %980 = vmatprep.subr.mxu0 0.0
    %981 = vmatpush2.msra.mxu0 %v842
    %982 = vmatprep.subr.mxu0 0.0
    %983 = vmatpush2.msra.mxu0 %v841
    %984 = vmatprep.subr.mxu0 0.0
    %985 = vmatpush2.msra.mxu0 %v840
    %986 = vmatprep.subr.mxu0 0.0
    %987 = vmatpush2.msra.mxu0 %v839
    %988 = vmatprep.subr.mxu0 0.0
    %989 = vmatpush2.msra.mxu0 %v838
    %990 = vmatprep.subr.mxu0 0.0
    %991 = vmatpush2.msra.mxu0 %v837
    %992 = vmatprep.subr.mxu0 0.0
    %993 = vmatpush2.msra.mxu0 %v836
    %994 = vmatprep.subr.mxu0 0.0
    %995 = vmatpush2.msra.mxu0 %v835
    %996 = vmatprep.subr.mxu0 0.0
    %997 = vmatpush2.msra.mxu0 %v834
    %998 = vmatprep.subr.mxu0 0.0
    %999 = vmatpush2.msra.mxu0 %v833
    %1000 = vmatprep.subr.mxu0 0.0
    %1001 = vmatpush2.msra.mxu0 %v832
    %1002 = vmatprep.subr.mxu0 0.0
    %1003 = vmatpush2.msra.mxu0 %v831
    %1004 = vmatprep.subr.mxu0 0.0
    %1005 = vmatpush2.msra.mxu0 %v830
    %1006 = vmatprep.mubr.f32.mxu0 %v807
    %1007 = vmatmul.mubr.f32.gmra.mxu0 %v806
    %v1008 = vpop.f32.mrf.mxu0
    %v1009 = vadd.f32 0.0, %v1008
    %v1010 = vpop.f32.mrf.mxu0
    %1011 = vdwg.mxu0
    %1012 = vmatprep.subr.mxu0 0.0
    %1013 = vmatpush1.msra.mxu0 %v861
    %1014 = vmatprep.subr.mxu0 0.0
    %1015 = vmatpush1.msra.mxu0 %v860
    %1016 = vmatprep.subr.mxu0 0.0
    %1017 = vmatpush1.msra.mxu0 %v859
    %1018 = vmatprep.subr.mxu0 0.0
    %1019 = vmatpush1.msra.mxu0 %v858
    %1020 = vmatprep.subr.mxu0 0.0
    %1021 = vmatpush1.msra.mxu0 %v857
    %1022 = vmatprep.subr.mxu0 0.0
    %1023 = vmatpush1.msra.mxu0 %v856
    %1024 = vmatprep.subr.mxu0 0.0
    %1025 = vmatpush1.msra.mxu0 %v855
    %1026 = vmatprep.subr.mxu0 0.0
    %1027 = vmatpush1.msra.mxu0 %v854
    %1028 = vmatprep.subr.mxu0 0.0
    %1029 = vmatpush1.msra.mxu0 %v853
    %1030 = vmatprep.subr.mxu0 0.0
    %1031 = vmatpush1.msra.mxu0 %v852
    %1032 = vmatprep.subr.mxu0 0.0
    %1033 = vmatpush1.msra.mxu0 %v851
    %1034 = vmatprep.subr.mxu0 0.0
    %1035 = vmatpush1.msra.mxu0 %v850
    %1036 = vmatprep.subr.mxu0 0.0
    %1037 = vmatpush1.msra.mxu0 %v849
    %1038 = vmatprep.subr.mxu0 0.0
    %1039 = vmatpush1.msra.mxu0 %v848
    %1040 = vmatprep.subr.mxu0 0.0
    %1041 = vmatpush1.msra.mxu0 %v847
    %1042 = vmatprep.subr.mxu0 0.0
    %1043 = vmatpush1.msra.mxu0 %v846
    %1044 = vmatprep.subr.mxu0 0.0
    %1045 = vmatpush2.msra.mxu0 %v877
    %1046 = vmatprep.subr.mxu0 0.0
    %1047 = vmatpush2.msra.mxu0 %v876
    %1048 = vmatprep.subr.mxu0 0.0
    %1049 = vmatpush2.msra.mxu0 %v875
    %1050 = vmatprep.subr.mxu0 0.0
    %1051 = vmatpush2.msra.mxu0 %v874
    %1052 = vmatprep.subr.mxu0 0.0
    %1053 = vmatpush2.msra.mxu0 %v873
    %1054 = vmatprep.subr.mxu0 0.0
    %1055 = vmatpush2.msra.mxu0 %v872
    %1056 = vmatprep.subr.mxu0 0.0
    %1057 = vmatpush2.msra.mxu0 %v871
    %1058 = vmatprep.subr.mxu0 0.0
    %1059 = vmatpush2.msra.mxu0 %v870
    %1060 = vmatprep.subr.mxu0 0.0
    %1061 = vmatpush2.msra.mxu0 %v869
    %1062 = vmatprep.subr.mxu0 0.0
    %1063 = vmatpush2.msra.mxu0 %v868
    %1064 = vmatprep.subr.mxu0 0.0
    %1065 = vmatpush2.msra.mxu0 %v867
    %1066 = vmatprep.subr.mxu0 0.0
    %1067 = vmatpush2.msra.mxu0 %v866
    %1068 = vmatprep.subr.mxu0 0.0
    %1069 = vmatpush2.msra.mxu0 %v865
    %1070 = vmatprep.subr.mxu0 0.0
    %1071 = vmatpush2.msra.mxu0 %v864
    %1072 = vmatprep.subr.mxu0 0.0
    %1073 = vmatpush2.msra.mxu0 %v863
    %1074 = vmatprep.subr.mxu0 0.0
    %1075 = vmatpush2.msra.mxu0 %v862
    %1076 = vmatprep.mubr.f32.mxu0 %v809
    %1077 = vmatmul.mubr.f32.gmra.mxu0 %v808
    %v1078 = vpop.f32.mrf.mxu0
    %v1079 = vadd.f32 %v1009, %v1078
    %v1080 = vpop.f32.mrf.mxu0
    %1081 = vdwg.mxu0
    %1082 = vmatprep.subr.mxu0 0.0
    %1083 = vmatpush1.msra.mxu0 %v893
    %1084 = vmatprep.subr.mxu0 0.0
    %1085 = vmatpush1.msra.mxu0 %v892
    %1086 = vmatprep.subr.mxu0 0.0
    %1087 = vmatpush1.msra.mxu0 %v891
    %1088 = vmatprep.subr.mxu0 0.0
    %1089 = vmatpush1.msra.mxu0 %v890
    %1090 = vmatprep.subr.mxu0 0.0
    %1091 = vmatpush1.msra.mxu0 %v889
    %1092 = vmatprep.subr.mxu0 0.0
    %1093 = vmatpush1.msra.mxu0 %v888
    %1094 = vmatprep.subr.mxu0 0.0
    %1095 = vmatpush1.msra.mxu0 %v887
    %1096 = vmatprep.subr.mxu0 0.0
    %1097 = vmatpush1.msra.mxu0 %v886
    %1098 = vmatprep.subr.mxu0 0.0
    %1099 = vmatpush1.msra.mxu0 %v885
    %1100 = vmatprep.subr.mxu0 0.0
    %1101 = vmatpush1.msra.mxu0 %v884
    %1102 = vmatprep.subr.mxu0 0.0
    %1103 = vmatpush1.msra.mxu0 %v883
    %1104 = vmatprep.subr.mxu0 0.0
    %1105 = vmatpush1.msra.mxu0 %v882
    %1106 = vmatprep.subr.mxu0 0.0
    %1107 = vmatpush1.msra.mxu0 %v881
    %1108 = vmatprep.subr.mxu0 0.0
    %1109 = vmatpush1.msra.mxu0 %v880
    %1110 = vmatprep.subr.mxu0 0.0
    %1111 = vmatpush1.msra.mxu0 %v879
    %1112 = vmatprep.subr.mxu0 0.0
    %1113 = vmatpush1.msra.mxu0 %v878
    %1114 = vmatprep.subr.mxu0 0.0
    %1115 = vmatpush2.msra.mxu0 %v909
    %1116 = vmatprep.subr.mxu0 0.0
    %1117 = vmatpush2.msra.mxu0 %v908
    %1118 = vmatprep.subr.mxu0 0.0
    %1119 = vmatpush2.msra.mxu0 %v907
    %1120 = vmatprep.subr.mxu0 0.0
    %1121 = vmatpush2.msra.mxu0 %v906
    %1122 = vmatprep.subr.mxu0 0.0
    %1123 = vmatpush2.msra.mxu0 %v905
    %1124 = vmatprep.subr.mxu0 0.0
    %1125 = vmatpush2.msra.mxu0 %v904
    %1126 = vmatprep.subr.mxu0 0.0
    %1127 = vmatpush2.msra.mxu0 %v903
    %1128 = vmatprep.subr.mxu0 0.0
    %1129 = vmatpush2.msra.mxu0 %v902
    %1130 = vmatprep.subr.mxu0 0.0
    %1131 = vmatpush2.msra.mxu0 %v901
    %1132 = vmatprep.subr.mxu0 0.0
    %1133 = vmatpush2.msra.mxu0 %v900
    %1134 = vmatprep.subr.mxu0 0.0
    %1135 = vmatpush2.msra.mxu0 %v899
    %1136 = vmatprep.subr.mxu0 0.0
    %1137 = vmatpush2.msra.mxu0 %v898
    %1138 = vmatprep.subr.mxu0 0.0
    %1139 = vmatpush2.msra.mxu0 %v897
    %1140 = vmatprep.subr.mxu0 0.0
    %1141 = vmatpush2.msra.mxu0 %v896
    %1142 = vmatprep.subr.mxu0 0.0
    %1143 = vmatpush2.msra.mxu0 %v895
    %1144 = vmatprep.subr.mxu0 0.0
    %1145 = vmatpush2.msra.mxu0 %v894
    %1146 = vmatprep.mubr.f32.mxu0 %v811
    %1147 = vmatmul.mubr.f32.gmra.mxu0 %v810
    %v1148 = vpop.f32.mrf.mxu0
    %v1149 = vadd.f32 %v1079, %v1148
    %v1150 = vpop.f32.mrf.mxu0
    %1151 = vdwg.mxu0
    %1152 = vmatprep.subr.mxu0 0.0
    %1153 = vmatpush1.msra.mxu0 %v925
    %1154 = vmatprep.subr.mxu0 0.0
    %1155 = vmatpush1.msra.mxu0 %v924
    %1156 = vmatprep.subr.mxu0 0.0
    %1157 = vmatpush1.msra.mxu0 %v923
    %1158 = vmatprep.subr.mxu0 0.0
    %1159 = vmatpush1.msra.mxu0 %v922
    %1160 = vmatprep.subr.mxu0 0.0
    %1161 = vmatpush1.msra.mxu0 %v921
    %1162 = vmatprep.subr.mxu0 0.0
    %1163 = vmatpush1.msra.mxu0 %v920
    %1164 = vmatprep.subr.mxu0 0.0
    %1165 = vmatpush1.msra.mxu0 %v919
    %1166 = vmatprep.subr.mxu0 0.0
    %1167 = vmatpush1.msra.mxu0 %v918
    %1168 = vmatprep.subr.mxu0 0.0
    %1169 = vmatpush1.msra.mxu0 %v917
    %1170 = vmatprep.subr.mxu0 0.0
    %1171 = vmatpush1.msra.mxu0 %v916
    %1172 = vmatprep.subr.mxu0 0.0
    %1173 = vmatpush1.msra.mxu0 %v915
    %1174 = vmatprep.subr.mxu0 0.0
    %1175 = vmatpush1.msra.mxu0 %v914
    %1176 = vmatprep.subr.mxu0 0.0
    %1177 = vmatpush1.msra.mxu0 %v913
    %1178 = vmatprep.subr.mxu0 0.0
    %1179 = vmatpush1.msra.mxu0 %v912
    %1180 = vmatprep.subr.mxu0 0.0
    %1181 = vmatpush1.msra.mxu0 %v911
    %1182 = vmatprep.subr.mxu0 0.0
    %1183 = vmatpush1.msra.mxu0 %v910
    %1184 = vmatprep.subr.mxu0 0.0
    %1185 = vmatpush2.msra.mxu0 %v941
    %1186 = vmatprep.subr.mxu0 0.0
    %1187 = vmatpush2.msra.mxu0 %v940
    %1188 = vmatprep.subr.mxu0 0.0
    %1189 = vmatpush2.msra.mxu0 %v939
    %1190 = vmatprep.subr.mxu0 0.0
    %1191 = vmatpush2.msra.mxu0 %v938
    %1192 = vmatprep.subr.mxu0 0.0
    %1193 = vmatpush2.msra.mxu0 %v937
    %1194 = vmatprep.subr.mxu0 0.0
    %1195 = vmatpush2.msra.mxu0 %v936
    %1196 = vmatprep.subr.mxu0 0.0
    %1197 = vmatpush2.msra.mxu0 %v935
    %1198 = vmatprep.subr.mxu0 0.0
    %1199 = vmatpush2.msra.mxu0 %v934
    %1200 = vmatprep.subr.mxu0 0.0
    %1201 = vmatpush2.msra.mxu0 %v933
    %1202 = vmatprep.subr.mxu0 0.0
    %1203 = vmatpush2.msra.mxu0 %v932
    %1204 = vmatprep.subr.mxu0 0.0
    %1205 = vmatpush2.msra.mxu0 %v931
    %1206 = vmatprep.subr.mxu0 0.0
    %1207 = vmatpush2.msra.mxu0 %v930
    %1208 = vmatprep.subr.mxu0 0.0
    %1209 = vmatpush2.msra.mxu0 %v929
    %1210 = vmatprep.subr.mxu0 0.0
    %1211 = vmatpush2.msra.mxu0 %v928
    %1212 = vmatprep.subr.mxu0 0.0
    %1213 = vmatpush2.msra.mxu0 %v927
    %1214 = vmatprep.subr.mxu0 0.0
    %1215 = vmatpush2.msra.mxu0 %v926
    %1216 = vmatprep.mubr.f32.mxu0 %v813
    %1217 = vmatmul.mubr.f32.gmra.mxu0 %v812
    %v1218 = vpop.f32.mrf.mxu0
    %v1219 = vadd.f32 %v1149, %v1218
    %v1220 = vpop.f32.mrf.mxu0
    %1221 = vdwg.mxu0
    %vm1222 = vcmask 58368
    %v1223 = vsel %vm1222, %v1219, -inf
    %1224 = vmax.xlane.f32.xlu0 %v1223
    %v1225 = vpop.xlane.xlu0 %1224
    %v1226 = vsub.f32 %v1219, %v1225
    %v1227 = vmul.f32 %v1226, 1.442695
    %v1228 = vpow.pop %v1227
    %v1229 = vsel %vm1222, %v1228, 0.0
    %1230 = vadd.xlane.f32.xlu0 %v1229
    %v1231 = vpop.xlane.xlu0 %1230
    %v1232 = vrcp.pop %v1231
    %v1233 = vmul.f32 %v1228, %v1232
    %1234 = vst.msk [vmem:[#allocation5] sm:$0x3] %vm1222, %v1233
    // Predicated region
    $region30: #{tpu_custom_call.1} parent=1 // pred_check
      _
    $region31: #{tpu_custom_call.1} parent=1 // pred_check_branch
      %1236 = sbr.rel (0) target = $region33
    $region32: #{tpu_custom_call.1} parent=1 // pred_region
      %s1238 = ssub.s32 32, 32
      %1239 = vsyncadd [#allocation4], %s1238
      %s1241 = sshll.u32 [#allocation5], 4
      %s1242 = int_to_ptr.vmem [resolvable:$true] %s1241
      %1244 = dma.vmem_to_hbm [thread:$0]  %s1242, 32, %s6, [#allocation4]
    $region33: #{tpu_custom_call.1} parent=1 // pred_fallthru
      _
    // Predicated region
    $region34: #{tpu_custom_call.1} parent=1 // pred_check
      _
    $region35: #{tpu_custom_call.1} parent=1 // pred_check_branch
      %1246 = sbr.rel (0) target = $region37
    $region36: #{tpu_custom_call.1} parent=1 // pred_region
      %1247 = dma.done [#allocation4], 32
    $region37: #{tpu_custom_call.1} parent=1 // pred_fallthru
      _
    %1248 = vsyncpa [#allocation3], 1
    %1249 = vsyncpa [#allocation4], 1

</llo_original>
